<compile_context>
chip_gen: v7x
topology: tpu7x:2x2x1
jax: 0.10.0
libtpu: 0.0.40
codegen_flags: <defaults>
</compile_context>

<pallas_src>
import numpy as np
import jax
import jax.numpy as jnp
from jax.experimental import pallas as pl
from jax.experimental.pallas import tpu as pltpu


def centered_idft_matrix(n):
    """Matrix A such that A @ x == fftshift(ifft(ifftshift(x), norm='ortho'))."""
    idx = np.arange(n)
    w = np.exp(2j * np.pi * np.outer(idx, idx) / n) / np.sqrt(n)  # ortho ifft matrix
    f = n // 2          # fftshift roll (applied after the transform)
    c = (n + 1) // 2    # ifftshift roll (applied before the transform)
    return np.roll(np.roll(w, -c, axis=1), f, axis=0)


def opat_kernel(k_ref, mask_ref, smap_ref, dft_ref, out_ref):
    # k_ref, smap_ref : (2, nc, HW)   real/imag planes, coils stacked on sublanes
    # mask_ref        : (2, HW)       channel-wise mask (matches torch broadcast)
    # dft_ref         : (3, HW, HW)   [real(A2D^T), imag(A2D^T), real+imag]
    # out_ref         : (2, HW)
    m = mask_ref[...]
    kr = k_ref[0] * m[0:1]            # (nc, HW)
    ki = k_ref[1] * m[1:2]

    ar = dft_ref[0]                   # (HW, HW)
    ai = dft_ref[1]
    ari = dft_ref[2]                  # ar + ai, precomputed on host

    # centered 2-D ortho IFFT for all coils at once: IM = K @ A2D^T
    # Gauss 3-multiplication complex matmul -> 3 MXU issues instead of 4.
    p1 = jnp.dot(kr, ar, preferred_element_type=jnp.float32)
    p2 = jnp.dot(ki, ai, preferred_element_type=jnp.float32)
    p3 = jnp.dot(kr + ki, ari, preferred_element_type=jnp.float32)
    imr = p1 - p2                     # (nc, HW)  real(image)
    imi = p3 - p1 - p2                # (nc, HW)  imag(image)

    sr = smap_ref[0]                  # (nc, HW)
    si = smap_ref[1]

    # im * conj(Smap), reduced over coils (XLU sublane reduce), then a single
    # lane-dense (2, HW) store.
    out_r = jnp.sum(imr * sr + imi * si, axis=0, keepdims=True)   # (1, HW)
    out_i = jnp.sum(imi * sr - imr * si, axis=0, keepdims=True)   # (1, HW)
    out_ref[...] = jnp.concatenate([out_r, out_i], axis=0)


def opat_forward(smap, k, mask):
    B, nc, _, H, W = smap.shape
    HW = H * W

    # Precomputed centered 2-D ortho-IDFT matrix (Kronecker of the 1-D ones),
    # pre-transposed for right-multiplication by row-major flattened images.
    # NOTE: this grows as (HW)^2 floats; for H = W >~ 64 switch back to the
    # separable A_H / A_W two-matmul form (and re-derive tiles vs 64 MiB VMEM
    # on v7x).
    a2d_t = np.kron(centered_idft_matrix(H), centered_idft_matrix(W)).T
    dft = jnp.asarray(
        np.stack([a2d_t.real, a2d_t.imag, a2d_t.real + a2d_t.imag], axis=0),
        dtype=jnp.float32)                                        # (3, HW, HW)

    # Lane-dense layout plumbing (pure XLA transposes/reshapes, outside kernel):
    #   (B, nc, 2, H, W) -> (B, 2, nc, HW)
    k_flat = jnp.transpose(k, (0, 2, 1, 3, 4)).reshape(B, 2, nc, HW)
    s_flat = jnp.transpose(smap, (0, 2, 1, 3, 4)).reshape(B, 2, nc, HW)
    m_flat = mask.reshape(B, 2, HW)   # both channels kept: exact torch semantics
                                      # (for a real sampling mask the two planes
                                      # are identical and could be deduplicated)

    out = pl.pallas_call(
        opat_kernel,
        out_shape=jax.ShapeDtypeStruct((B, 2, HW), jnp.float32),
        grid_spec=pltpu.PrefetchScalarGridSpec(
            num_scalar_prefetch=0,
            grid=(B,),
            in_specs=[
                pl.BlockSpec((None, 2, nc, HW), lambda b: (b, 0, 0, 0)),  # k
                pl.BlockSpec((None, 2, HW),     lambda b: (b, 0, 0)),     # mask
                pl.BlockSpec((None, 2, nc, HW), lambda b: (b, 0, 0, 0)),  # Smap
                pl.BlockSpec((3, HW, HW),       lambda b: (0, 0, 0)),     # A2D^T planes
            ],
            out_specs=pl.BlockSpec((None, 2, HW), lambda b: (b, 0, 0)),
        ),
        compiler_params=pltpu.CompilerParams(
            dimension_semantics=("parallel",)),
    )(k_flat, m_flat, s_flat, dft)

    return out.reshape(B, 2, H, W)


def opat_reference(smap, k, mask):
    """Pure-JAX reference mirroring the PyTorch forward."""
    ku = k * mask[:, None]                                   # (B, nc, 2, H, W)
    kc = ku[:, :, 0] + 1j * ku[:, :, 1]                      # (B, nc, H, W) complex
    kc = jnp.fft.ifftshift(kc, axes=(-2, -1))
    imc = jnp.fft.ifft2(kc, axes=(-2, -1), norm="ortho")
    imc = jnp.fft.fftshift(imc, axes=(-2, -1))
    sc = smap[:, :, 0] + 1j * smap[:, :, 1]
    out = jnp.sum(imc * jnp.conj(sc), axis=1)
    return jnp.stack([out.real, out.imag], axis=1)


if __name__ == "__main__":
    key = jax.random.PRNGKey(0)
    B, nc, H, W = 2, 4, 16, 16
    k1, k2, k3 = jax.random.split(key, 3)

    # Deterministic "parameter": the sensitivity maps Smap from __init__.
    smap = jax.random.normal(k1, (B, nc, 2, H, W), dtype=jnp.float32)
    # Inputs: k-space data and undersampling mask (same mask on real & imag).
    kdata = jax.random.normal(k2, (B, nc, 2, H, W), dtype=jnp.float32)
    m = (jax.random.uniform(k3, (B, 1, H, W)) > 0.5).astype(jnp.float32)
    mask = jnp.concatenate([m, m], axis=1)                   # (B, 2, H, W)

    out = opat_forward(smap, kdata, mask)
    out = jax.block_until_ready(out)

    ref = opat_reference(smap, kdata, mask)
    assert out.shape == (B, 2, H, W)
    assert jnp.allclose(out, ref, atol=1e-4, rtol=1e-4), "mismatch vs FFT reference"

    print("KERNEL_OK")
</pallas_src>

<mosaic_0001>
module attributes {stable_mosaic.version = 11 : i64} {
  func.func @opat_kernel(%arg0: i32, %arg1: memref<1x2x4x256xf32, #tpu.memory_space<vmem>>, %arg2: memref<1x2x256xf32, #tpu.memory_space<vmem>>, %arg3: memref<1x2x4x256xf32, #tpu.memory_space<vmem>>, %arg4: memref<3x256x256xf32, #tpu.memory_space<vmem>>, %arg5: memref<1x2x256xf32, #tpu.memory_space<vmem>>) attributes {dimension_semantics = [#tpu.dimension_semantics<parallel>], iteration_bounds = array<i64: 2>, scalar_prefetch = 0 : i64, scratch_operands = 0 : i64, tpu.core_type = #tpu.core_type<tc>, window_params = [{transform_indices = @transform_0, window_bounds = array<i64: 1, 2, 4, 256>}, {transform_indices = @transform_1, window_bounds = array<i64: 1, 2, 256>}, {transform_indices = @transform_2, window_bounds = array<i64: 1, 2, 4, 256>}, {pipeline_mode = #tpu.pipeline_mode<synchronous>, transform_indices = @transform_3, window_bounds = array<i64: 3, 256, 256>}, {transform_indices = @transform_4, window_bounds = array<i64: 1, 2, 256>}]} {
    %c0 = arith.constant 0 : index
    %c0_0 = arith.constant 0 : index
    %c0_1 = arith.constant 0 : index
    %0 = vector.load %arg2[%c0, %c0_0, %c0_1] : memref<1x2x256xf32, #tpu.memory_space<vmem>>, vector<1x2x256xf32>
    %1 = vector.shape_cast %0 : vector<1x2x256xf32> to vector<2x256xf32>
    %c0_2 = arith.constant 0 : index
    %c0_3 = arith.constant 0 : index
    %c0_4 = arith.constant 0 : index
    %c0_5 = arith.constant 0 : index
    %2 = vector.load %arg1[%c0_2, %c0_3, %c0_4, %c0_5] : memref<1x2x4x256xf32, #tpu.memory_space<vmem>>, vector<1x1x4x256xf32>
    %3 = vector.shape_cast %2 : vector<1x1x4x256xf32> to vector<4x256xf32>
    %4 = vector.extract_strided_slice %1 {offsets = [0, 0], sizes = [1, 256], strides = [1, 1]} : vector<2x256xf32> to vector<1x256xf32>
    %5 = vector.broadcast %4 : vector<1x256xf32> to vector<4x256xf32>
    %6 = arith.mulf %3, %5 : vector<4x256xf32>
    %c0_6 = arith.constant 0 : index
    %c1 = arith.constant 1 : index
    %c0_7 = arith.constant 0 : index
    %c0_8 = arith.constant 0 : index
    %7 = vector.load %arg1[%c0_6, %c1, %c0_7, %c0_8] : memref<1x2x4x256xf32, #tpu.memory_space<vmem>>, vector<1x1x4x256xf32>
    %8 = vector.shape_cast %7 : vector<1x1x4x256xf32> to vector<4x256xf32>
    %9 = vector.extract_strided_slice %1 {offsets = [1, 0], sizes = [1, 256], strides = [1, 1]} : vector<2x256xf32> to vector<1x256xf32>
    %10 = vector.broadcast %9 : vector<1x256xf32> to vector<4x256xf32>
    %11 = arith.mulf %8, %10 : vector<4x256xf32>
    %c0_9 = arith.constant 0 : index
    %c0_10 = arith.constant 0 : index
    %c0_11 = arith.constant 0 : index
    %12 = vector.load %arg4[%c0_9, %c0_10, %c0_11] : memref<3x256x256xf32, #tpu.memory_space<vmem>>, vector<1x256x256xf32>
    %13 = vector.shape_cast %12 : vector<1x256x256xf32> to vector<256x256xf32>
    %c1_12 = arith.constant 1 : index
    %c0_13 = arith.constant 0 : index
    %c0_14 = arith.constant 0 : index
    %14 = vector.load %arg4[%c1_12, %c0_13, %c0_14] : memref<3x256x256xf32, #tpu.memory_space<vmem>>, vector<1x256x256xf32>
    %15 = vector.shape_cast %14 : vector<1x256x256xf32> to vector<256x256xf32>
    %c2 = arith.constant 2 : index
    %c0_15 = arith.constant 0 : index
    %c0_16 = arith.constant 0 : index
    %16 = vector.load %arg4[%c2, %c0_15, %c0_16] : memref<3x256x256xf32, #tpu.memory_space<vmem>>, vector<1x256x256xf32>
    %17 = vector.shape_cast %16 : vector<1x256x256xf32> to vector<256x256xf32>
    %cst = arith.constant dense<0.000000e+00> : vector<4x256xf32>
    %18 = tpu.matmul %6, %13, %cst {dimension_numbers = #tpu.dot_dimension_numbers<[1], [0], [0], [1], [0, 0, 1, 1], [], []>} : vector<4x256xf32>, vector<256x256xf32>, vector<4x256xf32> -> vector<4x256xf32>
    %cst_17 = arith.constant dense<0.000000e+00> : vector<4x256xf32>
    %19 = tpu.matmul %11, %15, %cst_17 {dimension_numbers = #tpu.dot_dimension_numbers<[1], [0], [0], [1], [0, 0, 1, 1], [], []>} : vector<4x256xf32>, vector<256x256xf32>, vector<4x256xf32> -> vector<4x256xf32>
    %20 = arith.addf %6, %11 : vector<4x256xf32>
    %cst_18 = arith.constant dense<0.000000e+00> : vector<4x256xf32>
    %21 = tpu.matmul %20, %17, %cst_18 {dimension_numbers = #tpu.dot_dimension_numbers<[1], [0], [0], [1], [0, 0, 1, 1], [], []>} : vector<4x256xf32>, vector<256x256xf32>, vector<4x256xf32> -> vector<4x256xf32>
    %22 = arith.subf %18, %19 : vector<4x256xf32>
    %23 = arith.subf %21, %18 : vector<4x256xf32>
    %24 = arith.subf %23, %19 : vector<4x256xf32>
    %c0_19 = arith.constant 0 : index
    %c0_20 = arith.constant 0 : index
    %c0_21 = arith.constant 0 : index
    %c0_22 = arith.constant 0 : index
    %25 = vector.load %arg3[%c0_19, %c0_20, %c0_21, %c0_22] : memref<1x2x4x256xf32, #tpu.memory_space<vmem>>, vector<1x1x4x256xf32>
    %26 = vector.shape_cast %25 : vector<1x1x4x256xf32> to vector<4x256xf32>
    %c0_23 = arith.constant 0 : index
    %c1_24 = arith.constant 1 : index
    %c0_25 = arith.constant 0 : index
    %c0_26 = arith.constant 0 : index
    %27 = vector.load %arg3[%c0_23, %c1_24, %c0_25, %c0_26] : memref<1x2x4x256xf32, #tpu.memory_space<vmem>>, vector<1x1x4x256xf32>
    %28 = vector.shape_cast %27 : vector<1x1x4x256xf32> to vector<4x256xf32>
    %29 = arith.mulf %22, %26 : vector<4x256xf32>
    %30 = arith.mulf %24, %28 : vector<4x256xf32>
    %31 = arith.addf %29, %30 : vector<4x256xf32>
    %cst_27 = arith.constant dense<0.000000e+00> : vector<256xf32>
    %32 = vector.multi_reduction <add>, %31, %cst_27 [0] : vector<4x256xf32> to vector<256xf32>
    %33 = vector.shape_cast %32 : vector<256xf32> to vector<1x256xf32>
    %34 = arith.mulf %24, %26 : vector<4x256xf32>
    %35 = arith.mulf %22, %28 : vector<4x256xf32>
    %36 = arith.subf %34, %35 : vector<4x256xf32>
    %cst_28 = arith.constant dense<0.000000e+00> : vector<256xf32>
    %37 = vector.multi_reduction <add>, %36, %cst_28 [0] : vector<4x256xf32> to vector<256xf32>
    %38 = vector.shape_cast %37 : vector<256xf32> to vector<1x256xf32>
    %39 = tpu.concatenate %33, %38 in 0 : vector<1x256xf32>, vector<1x256xf32> -> vector<2x256xf32>
    %c0_29 = arith.constant 0 : index
    %c0_30 = arith.constant 0 : index
    %c0_31 = arith.constant 0 : index
    %40 = vector.load %arg5[%c0_29, %c0_30, %c0_31] : memref<1x2x256xf32, #tpu.memory_space<vmem>>, vector<1x2x256xf32>
    %41 = vector.shape_cast %40 : vector<1x2x256xf32> to vector<2x256xf32>
    %42 = vector.shape_cast %39 : vector<2x256xf32> to vector<1x2x256xf32>
    tpu.vector_store %arg5[%c0_29, %c0_30, %c0_31], %42 {strides = array<i32>} : memref<1x2x256xf32, #tpu.memory_space<vmem>>, vector<1x2x256xf32>,
    return
  }
  func.func @transform_0(%arg0: i32) -> (i32, i32, i32, i32) {
    %c0_i32 = arith.constant 0 : i32
    %c0_i32_0 = arith.constant 0 : i32
    %c0_i32_1 = arith.constant 0 : i32
    %c0_i32_2 = arith.constant 0 : i32
    return %arg0, %c0_i32, %c0_i32_0, %c0_i32_1 : i32, i32, i32, i32
  }
  func.func @transform_1(%arg0: i32) -> (i32, i32, i32) {
    %c0_i32 = arith.constant 0 : i32
    %c0_i32_0 = arith.constant 0 : i32
    %c0_i32_1 = arith.constant 0 : i32
    return %arg0, %c0_i32, %c0_i32_0 : i32, i32, i32
  }
  func.func @transform_2(%arg0: i32) -> (i32, i32, i32, i32) {
    %c0_i32 = arith.constant 0 : i32
    %c0_i32_0 = arith.constant 0 : i32
    %c0_i32_1 = arith.constant 0 : i32
    %c0_i32_2 = arith.constant 0 : i32
    return %arg0, %c0_i32, %c0_i32_0, %c0_i32_1 : i32, i32, i32, i32
  }
  func.func @transform_3(%arg0: i32) -> (i32, i32, i32) {
    %c0_i32 = arith.constant 0 : i32
    %c0_i32_0 = arith.constant 0 : i32
    %c0_i32_1 = arith.constant 0 : i32
    %c0_i32_2 = arith.constant 0 : i32
    return %c0_i32, %c0_i32_0, %c0_i32_1 : i32, i32, i32
  }
  func.func @transform_4(%arg0: i32) -> (i32, i32, i32) {
    %c0_i32 = arith.constant 0 : i32
    %c0_i32_0 = arith.constant 0 : i32
    %c0_i32_1 = arith.constant 0 : i32
    return %arg0, %c0_i32, %c0_i32_0 : i32, i32, i32
  }
}

</mosaic_0001>

<llo_original>
// kernel: tpu_custom_call.1
$region0: #{tpu_custom_call.1}
  #allocation0 [shape = 'u32[]', space=smem, size = 0x4, offset = 0x4, fixed_abs, tag = 'smem constant byte address 0x4 - core index']
  #allocation1 [shape = 'u32[144,128]{1,0:T(1,128)}', space=vmem, size = 0x12000, scoped, tag = 'internal scratch']
  %s0 = inlined_call_operand.hbm [shape: f32[2,2,4,256], index: 0, kind: input, shape index: {}]
  %s1 = inlined_call_operand.hbm [shape: f32[2,2,256], index: 1, kind: input, shape index: {}]
  %s2 = inlined_call_operand.hbm [shape: f32[2,2,4,256], index: 2, kind: input, shape index: {}]
  %s3 = inlined_call_operand.hbm [shape: f32[3,256,256], index: 3, kind: input, shape index: {}]
  %s4 = inlined_call_operand.hbm [shape: f32[2,2,256], index: 4, kind: output, shape index: {}]
  %s5 = sld [smem:[#allocation0]]
  $region65: #{tpu_custom_call.1} parent=0
    _
  %s7 = ssub.s32 1, %s5
  %s8 = scalar_select 0, %s7, %s5
  $region1: #{tpu_custom_call.1} parent=0
    #allocation2 [shape = 'u8[16384]{0}', space=vmem, size = 0x4000, scoped, tag = 'input window, operand 0']
    #allocation3 [shape = 's32[2]{0}', space=sflag, size = 0x8, scoped, tag = 'scoped memory for tpu_custom_call.1']
    #allocation4 [shape = 's32[2]{0}', space=sflag, size = 0x8, scoped, tag = 'scoped memory for tpu_custom_call.1']
    #allocation5 [shape = 'u8[4096]{0}', space=vmem, size = 0x1000, scoped, tag = 'input window, operand 1']
    #allocation6 [shape = 's32[2]{0}', space=sflag, size = 0x8, scoped, tag = 'scoped memory for tpu_custom_call.1']
    #allocation7 [shape = 'u8[16384]{0}', space=vmem, size = 0x4000, scoped, tag = 'input window, operand 2']
    #allocation8 [shape = 'u8[786432]{0}', space=vmem, size = 0xc0000, scoped, tag = 'input window, operand 3, single buffered']
    #allocation9 [shape = 's32[1]{0}', space=sflag, size = 0x4, scoped, tag = 'scoped memory for tpu_custom_call.1']
    #allocation10 [shape = 'u8[4096]{0}', space=vmem, size = 0x1000, scoped, tag = 'output window, operand 0']
    %9 = vsyncpa [#allocation3], 0
    %s10 = scalar_lea.sflag [#allocation3], 1
    %11 = vsyncpa %s10, 0
    %12 = vsyncpa [#allocation6], 0
    %s13 = scalar_lea.sflag [#allocation6], 1
    %14 = vsyncpa %s13, 0
    %15 = vsyncpa [#allocation9], 0
    %16 = vsyncpa [#allocation4], 0
    %s17 = scalar_lea.sflag [#allocation4], 1
    %18 = vsyncpa %s17, 0
    loop: start=0, step=1, limit=4
    $region2: #{tpu_custom_call.1} parent=1 // loop_pre_header
      _
    $region3: #{tpu_custom_call.1} parent=1 // loop_header
      %s20 = sphi 0, %s24
      %p21 = scmp.ge.s32.totalorder %s20, 4
      %s30 = sphi 0, %s32
      %s33 = sphi 0, %s30
      %s34 = sphi 0, %s33
      %s50 = sphi 0, %s34
      %s56 = sphi 0, %s58
      %s59 = sphi 0, %s56
      %s60 = sphi 0, %s59
      %s76 = sphi 0, %s60
      %s82 = sphi 0, %s84
      %s85 = sphi 0, %s82
      %s86 = sphi 0, %s85
      %s102 = sphi 0, %s86
      %s106 = sphi 0, %s106
      %s108 = sphi 0, %s106
      %s109 = sphi 0, %s108
      %s123 = sphi 0, %s109
      %s129 = sphi 0, %s131
      %s132 = sphi 0, %s129
      %s133 = sphi 0, %s132
      %s149 = sphi 0, %s133
    $region4: #{tpu_custom_call.1} parent=1 // loop_header_branch
      %23 = sbr.rel (%p21) target = $region8
    $region5: #{tpu_custom_call.1} parent=1 // loop_body
      %s25 = ssub.s32 %s20, 1
      %s26 = ssub.s32 %s20, 2
      %s27 = sadd.s32 %s20, 1
      %s28 = ssub.s32 %s20, %s27
      %p29 = scmp.eq.s32.totalorder %s28, 0
      %s31 = sadd.s32 %s30, 1
      %s32 = scalar_select %p29, %s30, %s31
      %p35 = pneg %p29
      %p36 = scmp.eq.s32.totalorder %s20, 1
      %p37 = por %p35, %p36
      %p38 = scmp.ne.s32.totalorder %s30, %s33
      %p39 = scmp.eq.s32.totalorder %s20, 0
      %p40 = por %p38, %p39
      %p41 = scmp.ne.s32.totalorder %s30, %s33
      %p42 = scmp.eq.s32.totalorder %s25, 1
      %p43 = por %p41, %p42
      %p44 = scmp.ne.s32.totalorder %s33, %s34
      %p45 = scmp.eq.s32.totalorder %s25, 0
      %p46 = por %p44, %p45
      %p47 = scmp.ne.s32.totalorder %s33, %s34
      %p48 = scmp.eq.s32.totalorder %s26, 1
      %p49 = por %p47, %p48
      %p51 = scmp.ne.s32.totalorder %s34, %s50
      %p52 = scmp.eq.s32.totalorder %s26, 0
      %p53 = por %p51, %p52
      %s54 = ssub.s32 %s20, %s27
      %p55 = scmp.eq.s32.totalorder %s54, 0
      %s57 = sadd.s32 %s56, 1
      %s58 = scalar_select %p55, %s56, %s57
      %p61 = pneg %p55
      %p62 = scmp.eq.s32.totalorder %s20, 1
      %p63 = por %p61, %p62
      %p64 = scmp.ne.s32.totalorder %s56, %s59
      %p65 = scmp.eq.s32.totalorder %s20, 0
      %p66 = por %p64, %p65
      %p67 = scmp.ne.s32.totalorder %s56, %s59
      %p68 = scmp.eq.s32.totalorder %s25, 1
      %p69 = por %p67, %p68
      %p70 = scmp.ne.s32.totalorder %s59, %s60
      %p71 = scmp.eq.s32.totalorder %s25, 0
      %p72 = por %p70, %p71
      %p73 = scmp.ne.s32.totalorder %s59, %s60
      %p74 = scmp.eq.s32.totalorder %s26, 1
      %p75 = por %p73, %p74
      %p77 = scmp.ne.s32.totalorder %s60, %s76
      %p78 = scmp.eq.s32.totalorder %s26, 0
      %p79 = por %p77, %p78
      %s80 = ssub.s32 %s20, %s27
      %p81 = scmp.eq.s32.totalorder %s80, 0
      %s83 = sadd.s32 %s82, 1
      %s84 = scalar_select %p81, %s82, %s83
      %p87 = pneg %p81
      %p88 = scmp.eq.s32.totalorder %s20, 1
      %p89 = por %p87, %p88
      %p90 = scmp.ne.s32.totalorder %s82, %s85
      %p91 = scmp.eq.s32.totalorder %s20, 0
      %p92 = por %p90, %p91
      %p93 = scmp.ne.s32.totalorder %s82, %s85
      %p94 = scmp.eq.s32.totalorder %s25, 1
      %p95 = por %p93, %p94
      %p96 = scmp.ne.s32.totalorder %s85, %s86
      %p97 = scmp.eq.s32.totalorder %s25, 0
      %p98 = por %p96, %p97
      %p99 = scmp.ne.s32.totalorder %s85, %s86
      %p100 = scmp.eq.s32.totalorder %s26, 1
      %p101 = por %p99, %p100
      %p103 = scmp.ne.s32.totalorder %s86, %s102
      %p104 = scmp.eq.s32.totalorder %s26, 0
      %p105 = por %p103, %p104
      %s107 = sadd.s32 %s106, 1
      %p110 = scmp.eq.s32.totalorder %s20, 1
      %p111 = scmp.ne.s32.totalorder %s106, %s108
      %p112 = scmp.eq.s32.totalorder %s20, 0
      %p113 = por %p111, %p112
      %p114 = scmp.ne.s32.totalorder %s106, %s108
      %p115 = scmp.eq.s32.totalorder %s25, 1
      %p116 = por %p114, %p115
      %p117 = scmp.ne.s32.totalorder %s108, %s109
      %p118 = scmp.eq.s32.totalorder %s25, 0
      %p119 = por %p117, %p118
      %p120 = scmp.ne.s32.totalorder %s108, %s109
      %p121 = scmp.eq.s32.totalorder %s26, 1
      %p122 = por %p120, %p121
      %p124 = scmp.ne.s32.totalorder %s109, %s123
      %p125 = scmp.eq.s32.totalorder %s26, 0
      %p126 = por %p124, %p125
      %s127 = ssub.s32 %s20, %s27
      %p128 = scmp.eq.s32.totalorder %s127, 0
      %s130 = sadd.s32 %s129, 1
      %s131 = scalar_select %p128, %s129, %s130
      %p134 = pneg %p128
      %p135 = scmp.eq.s32.totalorder %s20, 1
      %p136 = por %p134, %p135
      %p137 = scmp.ne.s32.totalorder %s129, %s132
      %p138 = scmp.eq.s32.totalorder %s20, 0
      %p139 = por %p137, %p138
      %p140 = scmp.ne.s32.totalorder %s129, %s132
      %p141 = scmp.eq.s32.totalorder %s25, 1
      %p142 = por %p140, %p141
      %p143 = scmp.ne.s32.totalorder %s132, %s133
      %p144 = scmp.eq.s32.totalorder %s25, 0
      %p145 = por %p143, %p144
      %p146 = scmp.ne.s32.totalorder %s132, %s133
      %p147 = scmp.eq.s32.totalorder %s26, 1
      %p148 = por %p146, %p147
      %p150 = scmp.ne.s32.totalorder %s133, %s149
      %p151 = scmp.eq.s32.totalorder %s26, 0
      %p152 = por %p150, %p151
      %p153 = scmp.le.s32.totalorder 1, %s20
      %p154 = scmp.lt.s32.totalorder %s20, 3
      %p155 = pnand %p153, %p154
      %p156 = pneg %p155
      // Predicated region
      $region9: #{tpu_custom_call.1} parent=5 // pred_check
        _
      $region10: #{tpu_custom_call.1} parent=5 // pred_check_branch
        %158 = sbr.rel (%p155) target = $region12
      $region11: #{tpu_custom_call.1} parent=5 // pred_region
        %s159 = ssub.s32 %s20, 1
        // Predicated region
        $region13: #{tpu_custom_call.1} parent=11 // pred_check
          %p160 = pneg %p119
        $region14: #{tpu_custom_call.1} parent=11 // pred_check_branch
          %162 = sbr.rel (%p160) target = $region16
        $region15: #{tpu_custom_call.1} parent=11 // pred_region
          %s164 = ssub.s32 24576, 24576
          %165 = vsyncadd [#allocation9], %s164
          %s166 = sshll.u32 [#allocation8], 4
          %s167 = int_to_ptr.vmem [resolvable:$true] %s166
          %172 = dma.hbm_to_vmem [thread:$0]  %s3, 24576, %s167, [#allocation9], 256, 256, 16
        $region16: #{tpu_custom_call.1} parent=11 // pred_fallthru
          _
      $region12: #{tpu_custom_call.1} parent=5 // pred_fallthru
        _
      %p173 = scmp.lt.s32.totalorder %s20, 2
      // Predicated region
      $region17: #{tpu_custom_call.1} parent=5 // pred_check
        %p174 = pneg %p173
      $region18: #{tpu_custom_call.1} parent=5 // pred_check_branch
        %176 = sbr.rel (%p174) target = $region20
      $region19: #{tpu_custom_call.1} parent=5 // pred_region
        // Predicated region
        $region21: #{tpu_custom_call.1} parent=19 // pred_check
          %p177 = pneg %p40
        $region22: #{tpu_custom_call.1} parent=19 // pred_check_branch
          %179 = sbr.rel (%p177) target = $region24
        $region23: #{tpu_custom_call.1} parent=19 // pred_region
          %s180 = sand.u32 %s30, 1
          %s181 = scalar_lea.sflag [#allocation3], %s180
          %s182 = sand.u32 %s30, 1
          %s183 = smul.addr %s182, 16
          %s184 = scalar_lea.vmem [#allocation2], %s183
          %s186 = ssub.s32 256, 256
          %187 = vsyncadd %s181, %s186
          %s188 = smul.addr %s20, 4
          %s189 = smul.addr %s188, 64
          %s190 = scalar_lea.hbm %s0, %s189
          %s191 = sshll.u32 %s184, 4
          %s192 = int_to_ptr.vmem [resolvable:$true] %s191
          %197 = dma.hbm_to_vmem [thread:$0]  %s190, 256, %s192, %s181, 128, 128, 8
        $region24: #{tpu_custom_call.1} parent=19 // pred_fallthru
          _
        // Predicated region
        $region25: #{tpu_custom_call.1} parent=19 // pred_check
          %p198 = pneg %p66
        $region26: #{tpu_custom_call.1} parent=19 // pred_check_branch
          %200 = sbr.rel (%p198) target = $region28
        $region27: #{tpu_custom_call.1} parent=19 // pred_region
          %s201 = sand.u32 %s20, 1
          %s202 = scalar_lea.sflag [#allocation6], %s201
          %s203 = sand.u32 %s56, 1
          %s204 = smul.addr %s203, 4
          %s205 = scalar_lea.vmem [#allocation5], %s204
          %s207 = ssub.s32 64, 64
          %208 = vsyncadd %s202, %s207
          %s209 = smul.addr %s20, 2
          %s210 = smul.addr %s209, 32
          %s211 = scalar_lea.hbm %s1, %s210
          %s213 = sshll.u32 %s205, 4
          %s214 = int_to_ptr.vmem [resolvable:$true] %s213
          %216 = dma.hbm_to_vmem [thread:$0]  %s211, 64, %s214, %s202
        $region28: #{tpu_custom_call.1} parent=19 // pred_fallthru
          _
        // Predicated region
        $region29: #{tpu_custom_call.1} parent=19 // pred_check
          %p217 = pneg %p92
        $region30: #{tpu_custom_call.1} parent=19 // pred_check_branch
          %219 = sbr.rel (%p217) target = $region32
        $region31: #{tpu_custom_call.1} parent=19 // pred_region
          %s220 = sand.u32 %s20, 1
          %s221 = scalar_lea.sflag [#allocation6], %s220
          %s222 = sand.u32 %s82, 1
          %s223 = smul.addr %s222, 16
          %s224 = scalar_lea.vmem [#allocation7], %s223
          %s226 = ssub.s32 256, 256
          %227 = vsyncadd %s221, %s226
          %s228 = smul.addr %s20, 4
          %s229 = smul.addr %s228, 64
          %s230 = scalar_lea.hbm %s2, %s229
          %s231 = sshll.u32 %s224, 4
          %s232 = int_to_ptr.vmem [resolvable:$true] %s231
          %237 = dma.hbm_to_vmem [thread:$0]  %s230, 256, %s232, %s221, 128, 128, 8
        $region32: #{tpu_custom_call.1} parent=19 // pred_fallthru
          _
      $region20: #{tpu_custom_call.1} parent=5 // pred_fallthru
        _
      %p238 = scmp.le.s32.totalorder 1, %s20
      %p239 = scmp.lt.s32.totalorder %s20, 3
      %p240 = pnand %p238, %p239
      %p241 = pneg %p240
      // Predicated region
      $region33: #{tpu_custom_call.1} parent=5 // pred_check
        _
      $region34: #{tpu_custom_call.1} parent=5 // pred_check_branch
        %243 = sbr.rel (%p240) target = $region36
      $region35: #{tpu_custom_call.1} parent=5 // pred_region
        %s244 = ssub.s32 %s20, 1
        %s245 = sand.u32 %s33, 1
        %s246 = scalar_lea.sflag [#allocation3], %s245
        %s247 = sand.u32 %s33, 1
        %s248 = smul.addr %s247, 16
        %s249 = scalar_lea.vmem [#allocation2], %s248
        // Predicated region
        $region37: #{tpu_custom_call.1} parent=35 // pred_check
          %p250 = pneg %p46
        $region38: #{tpu_custom_call.1} parent=35 // pred_check_branch
          %252 = sbr.rel (%p250) target = $region40
        $region39: #{tpu_custom_call.1} parent=35 // pred_region
          %253 = dma.done %s246, 256
        $region40: #{tpu_custom_call.1} parent=35 // pred_fallthru
          _
        %s254 = sand.u32 %s25, 1
        %s255 = scalar_lea.sflag [#allocation6], %s254
        %s256 = sand.u32 %s59, 1
        %s257 = smul.addr %s256, 4
        %s258 = scalar_lea.vmem [#allocation5], %s257
        // Predicated region
        $region41: #{tpu_custom_call.1} parent=35 // pred_check
          %p259 = pneg %p72
        $region42: #{tpu_custom_call.1} parent=35 // pred_check_branch
          %261 = sbr.rel (%p259) target = $region44
        $region43: #{tpu_custom_call.1} parent=35 // pred_region
          %262 = dma.done %s255, 64
        $region44: #{tpu_custom_call.1} parent=35 // pred_fallthru
          _
        %s263 = sand.u32 %s25, 1
        %s264 = scalar_lea.sflag [#allocation6], %s263
        %s265 = sand.u32 %s85, 1
        %s266 = smul.addr %s265, 16
        %s267 = scalar_lea.vmem [#allocation7], %s266
        // Predicated region
        $region45: #{tpu_custom_call.1} parent=35 // pred_check
          %p268 = pneg %p98
        $region46: #{tpu_custom_call.1} parent=35 // pred_check_branch
          %270 = sbr.rel (%p268) target = $region48
        $region47: #{tpu_custom_call.1} parent=35 // pred_region
          %271 = dma.done %s264, 256
        $region48: #{tpu_custom_call.1} parent=35 // pred_fallthru
          _
        // Predicated region
        $region49: #{tpu_custom_call.1} parent=35 // pred_check
          %p272 = pneg %p119
        $region50: #{tpu_custom_call.1} parent=35 // pred_check_branch
          %274 = sbr.rel (%p272) target = $region52
        $region51: #{tpu_custom_call.1} parent=35 // pred_region
          %275 = dma.done [#allocation9], 24576
        $region52: #{tpu_custom_call.1} parent=35 // pred_fallthru
          _
        %s276 = sand.u32 %s33, 1
        %s277 = scalar_lea.sflag [#allocation3], %s276
        %s278 = sand.u32 %s33, 1
        %s279 = smul.addr %s278, 16
        %s280 = scalar_lea.vmem [#allocation2], %s279
        %p281 = pneg %p46
        %p282 = pneg %p43
        %s283 = sand.u32 %s25, 1
        %s284 = scalar_lea.sflag [#allocation6], %s283
        %s285 = sand.u32 %s59, 1
        %s286 = smul.addr %s285, 4
        %s287 = scalar_lea.vmem [#allocation5], %s286
        %p288 = pneg %p72
        %p289 = pneg %p69
        %s290 = sand.u32 %s25, 1
        %s291 = scalar_lea.sflag [#allocation6], %s290
        %s292 = sand.u32 %s85, 1
        %s293 = smul.addr %s292, 16
        %s294 = scalar_lea.vmem [#allocation7], %s293
        %p295 = pneg %p98
        %p296 = pneg %p95
        %p297 = pneg %p119
        %p298 = pneg %p116
        %p299 = pneg %p145
        %p300 = pneg %p142
        %s301 = sand.u32 %s132, 1
        %s302 = scalar_lea.sflag [#allocation4], %s301
        %s303 = sand.u32 %s132, 1
        %s304 = smul.addr %s303, 4
        %s305 = scalar_lea.vmem [#allocation10], %s304
        %v306 = vld [vmem:[%s258] sm:$0xf]
        %v307 = vld [vmem:[%s249] sm:$0xff]
        %v309 = vlaneseq
        %v310 = vshrl.u32 %v309, 7
        %v311 = vsub.s32 0, %v310
        %v312 = vrot.slane %v306, %v311
        %v313 = vlaneseq
        %v314 = vshrl.u32 %v313, 7
        %v315 = vsub.s32 2, %v314
        %v316 = vrot.slane %v306, %v315
        %v319 = vlaneseq
        %v320 = vshrl.u32 %v319, 7
        %v321 = vsub.s32 0, %v320
        %v322 = vrot.slane %v312, %v321
        %v323 = vlaneseq
        %v324 = vshrl.u32 %v323, 7
        %v325 = vsub.s32 0, %v324
        %v326 = vrot.slane %v316, %v325
        %v329 = vcombine.low %v322, %v326
        %v331 = vmul.f32 %v307, %v329
        %s332 = scalar_lea.vmem %s249, 8 [#allocation2]
        %v333 = vld [vmem:[%s332] sm:$0xff]
        %v334 = vlaneseq
        %v335 = vshrl.u32 %v334, 7
        %v336 = vsub.s32 1, %v335
        %v337 = vrot.slane %v306, %v336
        %v338 = vlaneseq
        %v339 = vshrl.u32 %v338, 7
        %v340 = vsub.s32 3, %v339
        %v341 = vrot.slane %v306, %v340
        %v344 = vlaneseq
        %v345 = vshrl.u32 %v344, 7
        %v346 = vsub.s32 1, %v345
        %v347 = vrot.slane %v337, %v346
        %v348 = vlaneseq
        %v349 = vshrl.u32 %v348, 7
        %v350 = vsub.s32 1, %v349
        %v351 = vrot.slane %v341, %v350
        %v354 = vcombine.low %v347, %v351
        %v356 = vmul.f32 %v333, %v354
        %v357 = vld [vmem:[#allocation8] sm:$0xff]
        %v358 = vld [vmem:[#allocation8 + $0x8] sm:$0xff]
        %v359 = vld [vmem:[#allocation8 + $0x10] sm:$0xff]
        %v360 = vld [vmem:[#allocation8 + $0x18] sm:$0xff]
        %v361 = vld [vmem:[#allocation8 + $0x20] sm:$0xff]
        %v362 = vld [vmem:[#allocation8 + $0x28] sm:$0xff]
        %v363 = vld [vmem:[#allocation8 + $0x30] sm:$0xff]
        %v364 = vld [vmem:[#allocation8 + $0x38] sm:$0xff]
        %v365 = vld [vmem:[#allocation8 + $0x40] sm:$0xff]
        %v366 = vld [vmem:[#allocation8 + $0x48] sm:$0xff]
        %v367 = vld [vmem:[#allocation8 + $0x50] sm:$0xff]
        %v368 = vld [vmem:[#allocation8 + $0x58] sm:$0xff]
        %v369 = vld [vmem:[#allocation8 + $0x60] sm:$0xff]
        %v370 = vld [vmem:[#allocation8 + $0x68] sm:$0xff]
        %v371 = vld [vmem:[#allocation8 + $0x70] sm:$0xff]
        %v372 = vld [vmem:[#allocation8 + $0x78] sm:$0xff]
        %v373 = vld [vmem:[#allocation8 + $0x80] sm:$0xff]
        %v374 = vld [vmem:[#allocation8 + $0x88] sm:$0xff]
        %v375 = vld [vmem:[#allocation8 + $0x90] sm:$0xff]
        %v376 = vld [vmem:[#allocation8 + $0x98] sm:$0xff]
        %v377 = vld [vmem:[#allocation8 + $0xa0] sm:$0xff]
        %v378 = vld [vmem:[#allocation8 + $0xa8] sm:$0xff]
        %v379 = vld [vmem:[#allocation8 + $0xb0] sm:$0xff]
        %v380 = vld [vmem:[#allocation8 + $0xb8] sm:$0xff]
        %v381 = vld [vmem:[#allocation8 + $0xc0] sm:$0xff]
        %v382 = vld [vmem:[#allocation8 + $0xc8] sm:$0xff]
        %v383 = vld [vmem:[#allocation8 + $0xd0] sm:$0xff]
        %v384 = vld [vmem:[#allocation8 + $0xd8] sm:$0xff]
        %v385 = vld [vmem:[#allocation8 + $0xe0] sm:$0xff]
        %v386 = vld [vmem:[#allocation8 + $0xe8] sm:$0xff]
        %v387 = vld [vmem:[#allocation8 + $0xf0] sm:$0xff]
        %v388 = vld [vmem:[#allocation8 + $0xf8] sm:$0xff]
        %v389 = vld [vmem:[#allocation8 + $0x100] sm:$0xff]
        %v390 = vld [vmem:[#allocation8 + $0x108] sm:$0xff]
        %v391 = vld [vmem:[#allocation8 + $0x110] sm:$0xff]
        %v392 = vld [vmem:[#allocation8 + $0x118] sm:$0xff]
        %v393 = vld [vmem:[#allocation8 + $0x120] sm:$0xff]
        %v394 = vld [vmem:[#allocation8 + $0x128] sm:$0xff]
        %v395 = vld [vmem:[#allocation8 + $0x130] sm:$0xff]
        %v396 = vld [vmem:[#allocation8 + $0x138] sm:$0xff]
        %v397 = vld [vmem:[#allocation8 + $0x140] sm:$0xff]
        %v398 = vld [vmem:[#allocation8 + $0x148] sm:$0xff]
        %v399 = vld [vmem:[#allocation8 + $0x150] sm:$0xff]
        %v400 = vld [vmem:[#allocation8 + $0x158] sm:$0xff]
        %v401 = vld [vmem:[#allocation8 + $0x160] sm:$0xff]
        %v402 = vld [vmem:[#allocation8 + $0x168] sm:$0xff]
        %v403 = vld [vmem:[#allocation8 + $0x170] sm:$0xff]
        %v404 = vld [vmem:[#allocation8 + $0x178] sm:$0xff]
        %v405 = vld [vmem:[#allocation8 + $0x180] sm:$0xff]
        %v406 = vld [vmem:[#allocation8 + $0x188] sm:$0xff]
        %v407 = vld [vmem:[#allocation8 + $0x190] sm:$0xff]
        %v408 = vld [vmem:[#allocation8 + $0x198] sm:$0xff]
        %v409 = vld [vmem:[#allocation8 + $0x1a0] sm:$0xff]
        %v410 = vld [vmem:[#allocation8 + $0x1a8] sm:$0xff]
        %v411 = vld [vmem:[#allocation8 + $0x1b0] sm:$0xff]
        %v412 = vld [vmem:[#allocation8 + $0x1b8] sm:$0xff]
        %v413 = vld [vmem:[#allocation8 + $0x1c0] sm:$0xff]
        %v414 = vld [vmem:[#allocation8 + $0x1c8] sm:$0xff]
        %v415 = vld [vmem:[#allocation8 + $0x1d0] sm:$0xff]
        %v416 = vld [vmem:[#allocation8 + $0x1d8] sm:$0xff]
        %v417 = vld [vmem:[#allocation8 + $0x1e0] sm:$0xff]
        %v418 = vld [vmem:[#allocation8 + $0x1e8] sm:$0xff]
        %v419 = vld [vmem:[#allocation8 + $0x1f0] sm:$0xff]
        %v420 = vld [vmem:[#allocation8 + $0x1f8] sm:$0xff]
        %s421 = scalar_lea.vmem [#allocation8], 512
        %v422 = vld [vmem:[%s421] sm:$0xff]
        %v423 = vld [vmem:[%s421 + $0x8] sm:$0xff]
        %v424 = vld [vmem:[%s421 + $0x10] sm:$0xff]
        %v425 = vld [vmem:[%s421 + $0x18] sm:$0xff]
        %v426 = vld [vmem:[%s421 + $0x20] sm:$0xff]
        %v427 = vld [vmem:[%s421 + $0x28] sm:$0xff]
        %v428 = vld [vmem:[%s421 + $0x30] sm:$0xff]
        %v429 = vld [vmem:[%s421 + $0x38] sm:$0xff]
        %v430 = vld [vmem:[%s421 + $0x40] sm:$0xff]
        %v431 = vld [vmem:[%s421 + $0x48] sm:$0xff]
        %v432 = vld [vmem:[%s421 + $0x50] sm:$0xff]
        %v433 = vld [vmem:[%s421 + $0x58] sm:$0xff]
        %v434 = vld [vmem:[%s421 + $0x60] sm:$0xff]
        %v435 = vld [vmem:[%s421 + $0x68] sm:$0xff]
        %v436 = vld [vmem:[%s421 + $0x70] sm:$0xff]
        %v437 = vld [vmem:[%s421 + $0x78] sm:$0xff]
        %v438 = vld [vmem:[%s421 + $0x80] sm:$0xff]
        %v439 = vld [vmem:[%s421 + $0x88] sm:$0xff]
        %v440 = vld [vmem:[%s421 + $0x90] sm:$0xff]
        %v441 = vld [vmem:[%s421 + $0x98] sm:$0xff]
        %v442 = vld [vmem:[%s421 + $0xa0] sm:$0xff]
        %v443 = vld [vmem:[%s421 + $0xa8] sm:$0xff]
        %v444 = vld [vmem:[%s421 + $0xb0] sm:$0xff]
        %v445 = vld [vmem:[%s421 + $0xb8] sm:$0xff]
        %v446 = vld [vmem:[%s421 + $0xc0] sm:$0xff]
        %v447 = vld [vmem:[%s421 + $0xc8] sm:$0xff]
        %v448 = vld [vmem:[%s421 + $0xd0] sm:$0xff]
        %v449 = vld [vmem:[%s421 + $0xd8] sm:$0xff]
        %v450 = vld [vmem:[%s421 + $0xe0] sm:$0xff]
        %v451 = vld [vmem:[%s421 + $0xe8] sm:$0xff]
        %v452 = vld [vmem:[%s421 + $0xf0] sm:$0xff]
        %v453 = vld [vmem:[%s421 + $0xf8] sm:$0xff]
        %v454 = vld [vmem:[%s421 + $0x100] sm:$0xff]
        %v455 = vld [vmem:[%s421 + $0x108] sm:$0xff]
        %v456 = vld [vmem:[%s421 + $0x110] sm:$0xff]
        %v457 = vld [vmem:[%s421 + $0x118] sm:$0xff]
        %v458 = vld [vmem:[%s421 + $0x120] sm:$0xff]
        %v459 = vld [vmem:[%s421 + $0x128] sm:$0xff]
        %v460 = vld [vmem:[%s421 + $0x130] sm:$0xff]
        %v461 = vld [vmem:[%s421 + $0x138] sm:$0xff]
        %v462 = vld [vmem:[%s421 + $0x140] sm:$0xff]
        %v463 = vld [vmem:[%s421 + $0x148] sm:$0xff]
        %v464 = vld [vmem:[%s421 + $0x150] sm:$0xff]
        %v465 = vld [vmem:[%s421 + $0x158] sm:$0xff]
        %v466 = vld [vmem:[%s421 + $0x160] sm:$0xff]
        %v467 = vld [vmem:[%s421 + $0x168] sm:$0xff]
        %v468 = vld [vmem:[%s421 + $0x170] sm:$0xff]
        %v469 = vld [vmem:[%s421 + $0x178] sm:$0xff]
        %v470 = vld [vmem:[%s421 + $0x180] sm:$0xff]
        %v471 = vld [vmem:[%s421 + $0x188] sm:$0xff]
        %v472 = vld [vmem:[%s421 + $0x190] sm:$0xff]
        %v473 = vld [vmem:[%s421 + $0x198] sm:$0xff]
        %v474 = vld [vmem:[%s421 + $0x1a0] sm:$0xff]
        %v475 = vld [vmem:[%s421 + $0x1a8] sm:$0xff]
        %v476 = vld [vmem:[%s421 + $0x1b0] sm:$0xff]
        %v477 = vld [vmem:[%s421 + $0x1b8] sm:$0xff]
        %v478 = vld [vmem:[%s421 + $0x1c0] sm:$0xff]
        %v479 = vld [vmem:[%s421 + $0x1c8] sm:$0xff]
        %v480 = vld [vmem:[%s421 + $0x1d0] sm:$0xff]
        %v481 = vld [vmem:[%s421 + $0x1d8] sm:$0xff]
        %v482 = vld [vmem:[%s421 + $0x1e0] sm:$0xff]
        %v483 = vld [vmem:[%s421 + $0x1e8] sm:$0xff]
        %v484 = vld [vmem:[%s421 + $0x1f0] sm:$0xff]
        %v485 = vld [vmem:[%s421 + $0x1f8] sm:$0xff]
        %s486 = scalar_lea.vmem [#allocation8], 1024
        %v487 = vld [vmem:[%s486] sm:$0xff]
        %v488 = vld [vmem:[%s486 + $0x8] sm:$0xff]
        %v489 = vld [vmem:[%s486 + $0x10] sm:$0xff]
        %v490 = vld [vmem:[%s486 + $0x18] sm:$0xff]
        %v491 = vld [vmem:[%s486 + $0x20] sm:$0xff]
        %v492 = vld [vmem:[%s486 + $0x28] sm:$0xff]
        %v493 = vld [vmem:[%s486 + $0x30] sm:$0xff]
        %v494 = vld [vmem:[%s486 + $0x38] sm:$0xff]
        %v495 = vld [vmem:[%s486 + $0x40] sm:$0xff]
        %v496 = vld [vmem:[%s486 + $0x48] sm:$0xff]
        %v497 = vld [vmem:[%s486 + $0x50] sm:$0xff]
        %v498 = vld [vmem:[%s486 + $0x58] sm:$0xff]
        %v499 = vld [vmem:[%s486 + $0x60] sm:$0xff]
        %v500 = vld [vmem:[%s486 + $0x68] sm:$0xff]
        %v501 = vld [vmem:[%s486 + $0x70] sm:$0xff]
        %v502 = vld [vmem:[%s486 + $0x78] sm:$0xff]
        %v503 = vld [vmem:[%s486 + $0x80] sm:$0xff]
        %v504 = vld [vmem:[%s486 + $0x88] sm:$0xff]
        %v505 = vld [vmem:[%s486 + $0x90] sm:$0xff]
        %v506 = vld [vmem:[%s486 + $0x98] sm:$0xff]
        %v507 = vld [vmem:[%s486 + $0xa0] sm:$0xff]
        %v508 = vld [vmem:[%s486 + $0xa8] sm:$0xff]
        %v509 = vld [vmem:[%s486 + $0xb0] sm:$0xff]
        %v510 = vld [vmem:[%s486 + $0xb8] sm:$0xff]
        %v511 = vld [vmem:[%s486 + $0xc0] sm:$0xff]
        %v512 = vld [vmem:[%s486 + $0xc8] sm:$0xff]
        %v513 = vld [vmem:[%s486 + $0xd0] sm:$0xff]
        %v514 = vld [vmem:[%s486 + $0xd8] sm:$0xff]
        %v515 = vld [vmem:[%s486 + $0xe0] sm:$0xff]
        %v516 = vld [vmem:[%s486 + $0xe8] sm:$0xff]
        %v517 = vld [vmem:[%s486 + $0xf0] sm:$0xff]
        %v518 = vld [vmem:[%s486 + $0xf8] sm:$0xff]
        %v519 = vld [vmem:[%s486 + $0x100] sm:$0xff]
        %v520 = vld [vmem:[%s486 + $0x108] sm:$0xff]
        %v521 = vld [vmem:[%s486 + $0x110] sm:$0xff]
        %v522 = vld [vmem:[%s486 + $0x118] sm:$0xff]
        %v523 = vld [vmem:[%s486 + $0x120] sm:$0xff]
        %v524 = vld [vmem:[%s486 + $0x128] sm:$0xff]
        %v525 = vld [vmem:[%s486 + $0x130] sm:$0xff]
        %v526 = vld [vmem:[%s486 + $0x138] sm:$0xff]
        %v527 = vld [vmem:[%s486 + $0x140] sm:$0xff]
        %v528 = vld [vmem:[%s486 + $0x148] sm:$0xff]
        %v529 = vld [vmem:[%s486 + $0x150] sm:$0xff]
        %v530 = vld [vmem:[%s486 + $0x158] sm:$0xff]
        %v531 = vld [vmem:[%s486 + $0x160] sm:$0xff]
        %v532 = vld [vmem:[%s486 + $0x168] sm:$0xff]
        %v533 = vld [vmem:[%s486 + $0x170] sm:$0xff]
        %v534 = vld [vmem:[%s486 + $0x178] sm:$0xff]
        %v535 = vld [vmem:[%s486 + $0x180] sm:$0xff]
        %v536 = vld [vmem:[%s486 + $0x188] sm:$0xff]
        %v537 = vld [vmem:[%s486 + $0x190] sm:$0xff]
        %v538 = vld [vmem:[%s486 + $0x198] sm:$0xff]
        %v539 = vld [vmem:[%s486 + $0x1a0] sm:$0xff]
        %v540 = vld [vmem:[%s486 + $0x1a8] sm:$0xff]
        %v541 = vld [vmem:[%s486 + $0x1b0] sm:$0xff]
        %v542 = vld [vmem:[%s486 + $0x1b8] sm:$0xff]
        %v543 = vld [vmem:[%s486 + $0x1c0] sm:$0xff]
        %v544 = vld [vmem:[%s486 + $0x1c8] sm:$0xff]
        %v545 = vld [vmem:[%s486 + $0x1d0] sm:$0xff]
        %v546 = vld [vmem:[%s486 + $0x1d8] sm:$0xff]
        %v547 = vld [vmem:[%s486 + $0x1e0] sm:$0xff]
        %v548 = vld [vmem:[%s486 + $0x1e8] sm:$0xff]
        %v549 = vld [vmem:[%s486 + $0x1f0] sm:$0xff]
        %v550 = vld [vmem:[%s486 + $0x1f8] sm:$0xff]
        %v552 = vcombine.high %v331, %v331
        %554 = vmatprep.subr.mxu0 %v358
        %555 = vmatpush1.msra.mxu0 %v357
        %556 = vmatprep.subr.mxu0 %v360
        %557 = vmatpush1.msra.mxu0 %v359
        %558 = vmatprep.subr.mxu0 %v362
        %559 = vmatpush1.msra.mxu0 %v361
        %560 = vmatprep.subr.mxu0 %v364
        %561 = vmatpush1.msra.mxu0 %v363
        %562 = vmatprep.subr.mxu0 %v366
        %563 = vmatpush1.msra.mxu0 %v365
        %564 = vmatprep.subr.mxu0 %v368
        %565 = vmatpush1.msra.mxu0 %v367
        %566 = vmatprep.subr.mxu0 %v370
        %567 = vmatpush1.msra.mxu0 %v369
        %568 = vmatprep.subr.mxu0 %v372
        %569 = vmatpush1.msra.mxu0 %v371
        %570 = vmatprep.subr.mxu0 %v374
        %571 = vmatpush1.msra.mxu0 %v373
        %572 = vmatprep.subr.mxu0 %v376
        %573 = vmatpush1.msra.mxu0 %v375
        %574 = vmatprep.subr.mxu0 %v378
        %575 = vmatpush1.msra.mxu0 %v377
        %576 = vmatprep.subr.mxu0 %v380
        %577 = vmatpush1.msra.mxu0 %v379
        %578 = vmatprep.subr.mxu0 %v382
        %579 = vmatpush1.msra.mxu0 %v381
        %580 = vmatprep.subr.mxu0 %v384
        %581 = vmatpush1.msra.mxu0 %v383
        %582 = vmatprep.subr.mxu0 %v386
        %583 = vmatpush1.msra.mxu0 %v385
        %584 = vmatprep.subr.mxu0 %v388
        %585 = vmatpush1.msra.mxu0 %v387
        %586 = vmatprep.subr.mxu0 %v390
        %587 = vmatpush1.msra.mxu0 %v389
        %588 = vmatprep.subr.mxu0 %v392
        %589 = vmatpush1.msra.mxu0 %v391
        %590 = vmatprep.subr.mxu0 %v394
        %591 = vmatpush1.msra.mxu0 %v393
        %592 = vmatprep.subr.mxu0 %v396
        %593 = vmatpush1.msra.mxu0 %v395
        %594 = vmatprep.subr.mxu0 %v398
        %595 = vmatpush1.msra.mxu0 %v397
        %596 = vmatprep.subr.mxu0 %v400
        %597 = vmatpush1.msra.mxu0 %v399
        %598 = vmatprep.subr.mxu0 %v402
        %599 = vmatpush1.msra.mxu0 %v401
        %600 = vmatprep.subr.mxu0 %v404
        %601 = vmatpush1.msra.mxu0 %v403
        %602 = vmatprep.subr.mxu0 %v406
        %603 = vmatpush1.msra.mxu0 %v405
        %604 = vmatprep.subr.mxu0 %v408
        %605 = vmatpush1.msra.mxu0 %v407
        %606 = vmatprep.subr.mxu0 %v410
        %607 = vmatpush1.msra.mxu0 %v409
        %608 = vmatprep.subr.mxu0 %v412
        %609 = vmatpush1.msra.mxu0 %v411
        %610 = vmatprep.subr.mxu0 %v414
        %611 = vmatpush1.msra.mxu0 %v413
        %612 = vmatprep.subr.mxu0 %v416
        %613 = vmatpush1.msra.mxu0 %v415
        %614 = vmatprep.subr.mxu0 %v418
        %615 = vmatpush1.msra.mxu0 %v417
        %616 = vmatprep.subr.mxu0 %v420
        %617 = vmatpush1.msra.mxu0 %v419
        %618 = vmatprep.mubr.f32.mxu0 %v552
        %619 = vmatmul.mubr.f32.gmra.mrb[0].mxu0 %v331
        %v620 = vpop.f32.mrb[0].mxu0
        %v621 = vadd.f32 0.0, %v620
        %v622 = vpop.f32.mrb[0].mxu0
        %v623 = vadd.f32 0.0, %v622
        %624 = vdwg.mxu0
        %v626 = vcombine.high %v356, %v356
        %628 = vmatprep.subr.mxu0 %v423
        %629 = vmatpush1.msra.mxu0 %v422
        %630 = vmatprep.subr.mxu0 %v425
        %631 = vmatpush1.msra.mxu0 %v424
        %632 = vmatprep.subr.mxu0 %v427
        %633 = vmatpush1.msra.mxu0 %v426
        %634 = vmatprep.subr.mxu0 %v429
        %635 = vmatpush1.msra.mxu0 %v428
        %636 = vmatprep.subr.mxu0 %v431
        %637 = vmatpush1.msra.mxu0 %v430
        %638 = vmatprep.subr.mxu0 %v433
        %639 = vmatpush1.msra.mxu0 %v432
        %640 = vmatprep.subr.mxu0 %v435
        %641 = vmatpush1.msra.mxu0 %v434
        %642 = vmatprep.subr.mxu0 %v437
        %643 = vmatpush1.msra.mxu0 %v436
        %644 = vmatprep.subr.mxu0 %v439
        %645 = vmatpush1.msra.mxu0 %v438
        %646 = vmatprep.subr.mxu0 %v441
        %647 = vmatpush1.msra.mxu0 %v440
        %648 = vmatprep.subr.mxu0 %v443
        %649 = vmatpush1.msra.mxu0 %v442
        %650 = vmatprep.subr.mxu0 %v445
        %651 = vmatpush1.msra.mxu0 %v444
        %652 = vmatprep.subr.mxu0 %v447
        %653 = vmatpush1.msra.mxu0 %v446
        %654 = vmatprep.subr.mxu0 %v449
        %655 = vmatpush1.msra.mxu0 %v448
        %656 = vmatprep.subr.mxu0 %v451
        %657 = vmatpush1.msra.mxu0 %v450
        %658 = vmatprep.subr.mxu0 %v453
        %659 = vmatpush1.msra.mxu0 %v452
        %660 = vmatprep.subr.mxu0 %v455
        %661 = vmatpush1.msra.mxu0 %v454
        %662 = vmatprep.subr.mxu0 %v457
        %663 = vmatpush1.msra.mxu0 %v456
        %664 = vmatprep.subr.mxu0 %v459
        %665 = vmatpush1.msra.mxu0 %v458
        %666 = vmatprep.subr.mxu0 %v461
        %667 = vmatpush1.msra.mxu0 %v460
        %668 = vmatprep.subr.mxu0 %v463
        %669 = vmatpush1.msra.mxu0 %v462
        %670 = vmatprep.subr.mxu0 %v465
        %671 = vmatpush1.msra.mxu0 %v464
        %672 = vmatprep.subr.mxu0 %v467
        %673 = vmatpush1.msra.mxu0 %v466
        %674 = vmatprep.subr.mxu0 %v469
        %675 = vmatpush1.msra.mxu0 %v468
        %676 = vmatprep.subr.mxu0 %v471
        %677 = vmatpush1.msra.mxu0 %v470
        %678 = vmatprep.subr.mxu0 %v473
        %679 = vmatpush1.msra.mxu0 %v472
        %680 = vmatprep.subr.mxu0 %v475
        %681 = vmatpush1.msra.mxu0 %v474
        %682 = vmatprep.subr.mxu0 %v477
        %683 = vmatpush1.msra.mxu0 %v476
        %684 = vmatprep.subr.mxu0 %v479
        %685 = vmatpush1.msra.mxu0 %v478
        %686 = vmatprep.subr.mxu0 %v481
        %687 = vmatpush1.msra.mxu0 %v480
        %688 = vmatprep.subr.mxu0 %v483
        %689 = vmatpush1.msra.mxu0 %v482
        %690 = vmatprep.subr.mxu0 %v485
        %691 = vmatpush1.msra.mxu0 %v484
        %692 = vmatprep.mubr.f32.mxu0 %v626
        %693 = vmatmul.mubr.f32.gmra.mrb[0].mxu0 %v356
        %v694 = vpop.f32.mrb[0].mxu0
        %v695 = vadd.f32 0.0, %v694
        %v696 = vpop.f32.mrb[0].mxu0
        %v697 = vadd.f32 0.0, %v696
        %698 = vdwg.mxu0
        %v699 = vadd.f32 %v331, %v356
        %v701 = vcombine.high %v699, %v699
        %703 = vmatprep.subr.mxu0 %v488
        %704 = vmatpush1.msra.mxu0 %v487
        %705 = vmatprep.subr.mxu0 %v490
        %706 = vmatpush1.msra.mxu0 %v489
        %707 = vmatprep.subr.mxu0 %v492
        %708 = vmatpush1.msra.mxu0 %v491
        %709 = vmatprep.subr.mxu0 %v494
        %710 = vmatpush1.msra.mxu0 %v493
        %711 = vmatprep.subr.mxu0 %v496
        %712 = vmatpush1.msra.mxu0 %v495
        %713 = vmatprep.subr.mxu0 %v498
        %714 = vmatpush1.msra.mxu0 %v497
        %715 = vmatprep.subr.mxu0 %v500
        %716 = vmatpush1.msra.mxu0 %v499
        %717 = vmatprep.subr.mxu0 %v502
        %718 = vmatpush1.msra.mxu0 %v501
        %719 = vmatprep.subr.mxu0 %v504
        %720 = vmatpush1.msra.mxu0 %v503
        %721 = vmatprep.subr.mxu0 %v506
        %722 = vmatpush1.msra.mxu0 %v505
        %723 = vmatprep.subr.mxu0 %v508
        %724 = vmatpush1.msra.mxu0 %v507
        %725 = vmatprep.subr.mxu0 %v510
        %726 = vmatpush1.msra.mxu0 %v509
        %727 = vmatprep.subr.mxu0 %v512
        %728 = vmatpush1.msra.mxu0 %v511
        %729 = vmatprep.subr.mxu0 %v514
        %730 = vmatpush1.msra.mxu0 %v513
        %731 = vmatprep.subr.mxu0 %v516
        %732 = vmatpush1.msra.mxu0 %v515
        %733 = vmatprep.subr.mxu0 %v518
        %734 = vmatpush1.msra.mxu0 %v517
        %735 = vmatprep.subr.mxu0 %v520
        %736 = vmatpush1.msra.mxu0 %v519
        %737 = vmatprep.subr.mxu0 %v522
        %738 = vmatpush1.msra.mxu0 %v521
        %739 = vmatprep.subr.mxu0 %v524
        %740 = vmatpush1.msra.mxu0 %v523
        %741 = vmatprep.subr.mxu0 %v526
        %742 = vmatpush1.msra.mxu0 %v525
        %743 = vmatprep.subr.mxu0 %v528
        %744 = vmatpush1.msra.mxu0 %v527
        %745 = vmatprep.subr.mxu0 %v530
        %746 = vmatpush1.msra.mxu0 %v529
        %747 = vmatprep.subr.mxu0 %v532
        %748 = vmatpush1.msra.mxu0 %v531
        %749 = vmatprep.subr.mxu0 %v534
        %750 = vmatpush1.msra.mxu0 %v533
        %751 = vmatprep.subr.mxu0 %v536
        %752 = vmatpush1.msra.mxu0 %v535
        %753 = vmatprep.subr.mxu0 %v538
        %754 = vmatpush1.msra.mxu0 %v537
        %755 = vmatprep.subr.mxu0 %v540
        %756 = vmatpush1.msra.mxu0 %v539
        %757 = vmatprep.subr.mxu0 %v542
        %758 = vmatpush1.msra.mxu0 %v541
        %759 = vmatprep.subr.mxu0 %v544
        %760 = vmatpush1.msra.mxu0 %v543
        %761 = vmatprep.subr.mxu0 %v546
        %762 = vmatpush1.msra.mxu0 %v545
        %763 = vmatprep.subr.mxu0 %v548
        %764 = vmatpush1.msra.mxu0 %v547
        %765 = vmatprep.subr.mxu0 %v550
        %766 = vmatpush1.msra.mxu0 %v549
        %767 = vmatprep.mubr.f32.mxu0 %v701
        %768 = vmatmul.mubr.f32.gmra.mrb[0].mxu0 %v699
        %v769 = vpop.f32.mrb[0].mxu0
        %v770 = vadd.f32 0.0, %v769
        %v771 = vpop.f32.mrb[0].mxu0
        %v772 = vadd.f32 0.0, %v771
        %773 = vdwg.mxu0
        %v774 = vsub.f32 %v621, %v695
        %v775 = vsub.f32 %v623, %v697
        %v776 = vsub.f32 %v770, %v621
        %v777 = vsub.f32 %v772, %v623
        %v778 = vsub.f32 %v776, %v695
        %v779 = vsub.f32 %v777, %v697
        %v780 = vld [vmem:[%s267] sm:$0xff]
        %s781 = scalar_lea.vmem %s267, 8 [#allocation7]
        %v782 = vld [vmem:[%s781] sm:$0xff]
        %v784 = vcombine.high %v780, %v780
        %v786 = vmul.f32 %v774, %v780
        %v787 = vmul.f32 %v775, %v784
        %v789 = vcombine.high %v782, %v782
        %v791 = vmul.f32 %v778, %v782
        %v792 = vmul.f32 %v779, %v789
        %v793 = vadd.f32 %v786, %v791
        %v794 = vadd.f32 %v787, %v792
        %vm795 = vcmask 1043456
        %v796 = vsel %vm795, %v793, 0.0
        %v797 = vrot.slane %v796, 4
        %v798 = vadd.f32 %v796, %v797
        %v799 = vrot.slane %v798, 2
        %v800 = vadd.f32 %v798, %v799
        %v801 = vrot.slane %v800, 1
        %v802 = vadd.f32 %v800, %v801
        %v803 = vsel %vm795, %v794, 0.0
        %v804 = vrot.slane %v803, 4
        %v805 = vadd.f32 %v803, %v804
        %v806 = vrot.slane %v805, 2
        %v807 = vadd.f32 %v805, %v806
        %v808 = vrot.slane %v807, 1
        %v809 = vadd.f32 %v807, %v808
        %v810 = vmul.f32 %v778, %v780
        %v811 = vmul.f32 %v779, %v784
        %v812 = vmul.f32 %v774, %v782
        %v813 = vmul.f32 %v775, %v789
        %v814 = vsub.f32 %v810, %v812
        %v815 = vsub.f32 %v811, %v813
        %v816 = vsel %vm795, %v814, 0.0
        %v817 = vrot.slane %v816, 4
        %v818 = vadd.f32 %v816, %v817
        %v819 = vrot.slane %v818, 2
        %v820 = vadd.f32 %v818, %v819
        %v821 = vrot.slane %v820, 1
        %v822 = vadd.f32 %v820, %v821
        %v823 = vsel %vm795, %v815, 0.0
        %v824 = vrot.slane %v823, 4
        %v825 = vadd.f32 %v823, %v824
        %v826 = vrot.slane %v825, 2
        %v827 = vadd.f32 %v825, %v826
        %v828 = vrot.slane %v827, 1
        %v829 = vadd.f32 %v827, %v828
        %vm830 = vcmask 1040384
        %v831 = vsel %vm830, %v802, %v822
        %v832 = vsel %vm830, %v809, %v829
        %v835 = vcombine.low %v831, %v832
        %v837 = vunpack.c.l.s4 1983009808
        %v838 = vunpack.c.0.s8 %v837
        %v839 = vlaneseq
        %v840 = vshrl.u32 %v839, 7
        %v841 = vsub.s32 %v838, %v840
        %v842 = vrot.slane %v835, %v841
        %844 = vst [vmem:[%s305] sm:$0xf] %v842
        %s845 = sand.u32 %s132, 1
        %s846 = scalar_lea.sflag [#allocation4], %s845
        %s847 = sand.u32 %s132, 1
        %s848 = smul.addr %s847, 4
        %s849 = scalar_lea.vmem [#allocation10], %s848
        // Predicated region
        $region53: #{tpu_custom_call.1} parent=35 // pred_check
          %p850 = pneg %p142
        $region54: #{tpu_custom_call.1} parent=35 // pred_check_branch
          %852 = sbr.rel (%p850) target = $region56
        $region55: #{tpu_custom_call.1} parent=35 // pred_region
          %s854 = ssub.s32 64, 64
          %855 = vsyncadd %s846, %s854
          %s856 = smul.addr %s25, 2
          %s857 = smul.addr %s856, 32
          %s858 = scalar_lea.hbm %s4, %s857
          %s860 = sshll.u32 %s849, 4
          %s861 = int_to_ptr.vmem [resolvable:$true] %s860
          %863 = dma.vmem_to_hbm [thread:$0]  %s861, 64, %s858, %s846
        $region56: #{tpu_custom_call.1} parent=35 // pred_fallthru
          _
      $region36: #{tpu_custom_call.1} parent=5 // pred_fallthru
        _
      %p864 = scmp.le.s32.totalorder 2, %s20
      // Predicated region
      $region57: #{tpu_custom_call.1} parent=5 // pred_check
        %p865 = pneg %p864
      $region58: #{tpu_custom_call.1} parent=5 // pred_check_branch
        %867 = sbr.rel (%p865) target = $region60
      $region59: #{tpu_custom_call.1} parent=5 // pred_region
        %s868 = ssub.s32 %s20, 2
        // Predicated region
        $region61: #{tpu_custom_call.1} parent=59 // pred_check
          %p869 = pneg %p148
        $region62: #{tpu_custom_call.1} parent=59 // pred_check_branch
          %871 = sbr.rel (%p869) target = $region64
        $region63: #{tpu_custom_call.1} parent=59 // pred_region
          %s872 = sand.u32 %s133, 1
          %s873 = scalar_lea.sflag [#allocation4], %s872
          %s874 = sand.u32 %s133, 1
          %s875 = smul.addr %s874, 4
          %s876 = scalar_lea.vmem [#allocation10], %s875
          %877 = dma.done %s873, 64
        $region64: #{tpu_custom_call.1} parent=59 // pred_fallthru
          _
      $region60: #{tpu_custom_call.1} parent=5 // pred_fallthru
        _
    $region6: #{tpu_custom_call.1} parent=1 // loop_footer
      %s24 = sadd.s32 1, %s20
    $region7: #{tpu_custom_call.1} parent=1 // loop_footer_branch
      %19 = sbr.rel target = $region3
    $region8: #{tpu_custom_call.1} parent=1 // loop_exit
      _
    %878 = vsyncpa [#allocation3], 1
    %s879 = scalar_lea.sflag [#allocation3], 1
    %880 = vsyncpa %s879, 1
    %881 = vsyncpa [#allocation6], 1
    %s882 = scalar_lea.sflag [#allocation6], 1
    %883 = vsyncpa %s882, 1
    %884 = vsyncpa [#allocation9], 1
    %885 = vsyncpa [#allocation4], 1
    %s886 = scalar_lea.sflag [#allocation4], 1
    %887 = vsyncpa %s886, 1

</llo_original>
